<compile_context>
chip_gen: v6e
topology: v6e:2x2x1
jax: 0.10.0
libtpu: 0.0.40
codegen_flags: <defaults>
</compile_context>

<pallas_src>
import jax
import jax.numpy as jnp
from jax.experimental import pallas as pl
from jax.experimental.pallas import tpu as pltpu


# Explicit scoped-VMEM request: safe on every generation
# (v5e/v6e: 128 MiB physical; v7x: 64 MiB physical).
VMEM_LIMIT_BYTES = 48 * 1024 * 1024
# Budget the double-buffered pipeline (2 arrays x 2 buffers) is sized against.
# Kept below the explicit limit to leave headroom for compiler scratch.
PIPELINE_VMEM_BUDGET_BYTES = 32 * 1024 * 1024


# ----------------------------------------------------------------------------
# Forward pass (exact semantic match of DummyHead.forward)
# ----------------------------------------------------------------------------
def dummy_head_forward(x):
    """DummyHead.forward: returns None. No kernel, no HBM traffic."""
    del x
    # TODO(synk): DummyHead.forward has no computation — it returns None.
    return None


# ----------------------------------------------------------------------------
# Demo 1: pure pass-through as a direct HBM->HBM DMA (no VMEM round trip)
# ----------------------------------------------------------------------------
def _hbm_copy_kernel(x_hbm_ref, o_hbm_ref, copy_sem):
    cp = pltpu.make_async_copy(x_hbm_ref, o_hbm_ref, copy_sem)
    cp.start()
    cp.wait()


def pallas_identity_hbm_copy(x: jnp.ndarray) -> jnp.ndarray:
    """Identity copy via one HBM->HBM DMA descriptor (any shape/dtype)."""
    return pl.pallas_call(
        _hbm_copy_kernel,
        out_shape=jax.ShapeDtypeStruct(x.shape, x.dtype),
        in_specs=[pl.BlockSpec(memory_space=pl.ANY)],
        out_specs=pl.BlockSpec(memory_space=pl.ANY),
        scratch_shapes=[pltpu.SemaphoreType.DMA],
    )(x)


# ----------------------------------------------------------------------------
# Demo 2: budget-tiled BlockSpec pipeline copy (VMEM path)
# ----------------------------------------------------------------------------
def _identity_kernel(x_ref, o_ref):
    # Pure pass-through: DummyHead performs no computation.
    o_ref[...] = x_ref[...]


def _sublane_multiple(itemsize: int) -> int:
    # 32-bit dtypes tile as (8,128); sub-32-bit dtypes pack along sublanes.
    return max(8, 32 // max(1, itemsize))


def _budget_tile_rows(rows: int, cols: int, itemsize: int,
                      budget_bytes: int = PIPELINE_VMEM_BUDGET_BYTES) -> int:
    """Largest row tile whose double-buffered in+out footprint fits the budget.

    Footprint = 2 arrays (in, out) x 2 pipeline buffers x tile bytes
              = 4 * tile_rows * cols * itemsize.
    """
    max_rows = budget_bytes // (4 * cols * itemsize)
    if max_rows >= rows:
        return rows  # full extent is always a legal block shape
    sub = _sublane_multiple(itemsize)
    tile = max(sub, (max_rows // sub) * sub)
    return min(tile, rows)


def pallas_identity_tiled(x2d: jnp.ndarray) -> jnp.ndarray:
    """Tiled pass-through of a (rows, cols) slab through the VMEM pipeline.

    Kept only as a data-path demo; it is NOT part of dummy_head_forward.
    In a real path, prefer input_output_aliases={0: 0} (or simply return x).
    """
    rows, cols = x2d.shape
    tile_rows = _budget_tile_rows(rows, cols, x2d.dtype.itemsize)
    grid = (pl.cdiv(rows, tile_rows),)

    return pl.pallas_call(
        _identity_kernel,
        out_shape=jax.ShapeDtypeStruct((rows, cols), x2d.dtype),
        grid=grid,
        in_specs=[pl.BlockSpec((tile_rows, cols), lambda i: (i, 0))],
        out_specs=pl.BlockSpec((tile_rows, cols), lambda i: (i, 0)),
        compiler_params=pltpu.CompilerParams(
            # Independent row tiles -> shard across TensorCores when the grid
            # has >= 2 steps (v7x megacore); harmless for a 1-step grid.
            dimension_semantics=("parallel",),
            vmem_limit_bytes=VMEM_LIMIT_BYTES,
        ),
    )(x2d)


def as_lane_dense_2d(x: jnp.ndarray) -> jnp.ndarray:
    """Flatten to (rows, cols) with cols a multiple of 128 whenever possible.

    Lane-dense output stores (unmasked vst) are the single biggest measured
    lever for mem-bound kernels; this keeps them regardless of H*W.
    """
    total = x.size
    if total % 128 != 0:
        # TODO(synk): non-128-multiple element counts fall back to the native
        # last dim and may incur masked vst.msk stores.
        return x.reshape(-1, x.shape[-1])
    cols = 128
    # Grow cols (divisor of total, multiple of 128, capped at 8192 lanes)
    # while keeping at least 8 sublane rows to tile / shard over.
    while (cols * 2 <= 8192
           and total % (cols * 2) == 0
           and total // (cols * 2) >= 8):
        cols *= 2
    return x.reshape(total // cols, cols)


if __name__ == "__main__":
    key = jax.random.PRNGKey(0)
    # Small NCHW input consistent with a pooler-head style module.
    x = jax.random.normal(key, (2, 4, 16, 16), dtype=jnp.float32)

    # Exact forward semantics: DummyHead(x) -> None (no kernel in hot path).
    out = dummy_head_forward(x)
    assert out is None

    # Data-path demo 1: direct HBM->HBM DMA identity (no VMEM round trip).
    y_dma = pallas_identity_hbm_copy(x)
    jax.block_until_ready(y_dma)
    assert jnp.array_equal(y_dma, x)

    # Data-path demo 2: budget-tiled, lane-dense VMEM pipeline copy.
    x2d = as_lane_dense_2d(x)               # (8, 256) for this input
    y_tiled = pallas_identity_tiled(x2d)
    jax.block_until_ready(y_tiled)
    assert jnp.array_equal(y_tiled, x2d)

    print("KERNEL_OK")
</pallas_src>

<mosaic_0001>
module attributes {stable_mosaic.version = 11 : i64} {
  func.func @_hbm_copy_kernel(%arg0: memref<2x4x16x16xf32, #tpu.memory_space<any>>, %arg1: memref<2x4x16x16xf32, #tpu.memory_space<any>>, %arg2: memref<!tpu.dma_semaphore, #tpu.memory_space<semaphore_mem>>) attributes {dimension_semantics = [], scalar_prefetch = 0 : i64, scratch_operands = 1 : i64, tpu.core_type = #tpu.core_type<tc>} {
    tpu.enqueue_dma source(%arg0 : memref<2x4x16x16xf32, #tpu.memory_space<any>>) target(%arg1 : memref<2x4x16x16xf32, #tpu.memory_space<any>>) target_semaphore(%arg2 : memref<!tpu.dma_semaphore, #tpu.memory_space<semaphore_mem>>)
    tpu.wait_dma2 semaphore(%arg2 : memref<!tpu.dma_semaphore, #tpu.memory_space<semaphore_mem>>) src(%arg0 : memref<2x4x16x16xf32, #tpu.memory_space<any>>) dst(%arg1 : memref<2x4x16x16xf32, #tpu.memory_space<any>>)
    return
  }
}

</mosaic_0001>

<llo_original>
// kernel: tpu_custom_call.1
$region0: #{tpu_custom_call.1}
  #allocation0 [shape = 'u32[]', space=smem, size = 0x4, offset = 0x4, fixed_abs, tag = 'smem constant byte address 0x4 - core index']
  #allocation1 [shape = 'u32[144,128]{1,0:T(1,128)}', space=vmem, size = 0x12000, scoped, tag = 'internal scratch']
  #allocation2 [shape = 's32[1]{0}', space=sflag, size = 0x4, scoped, tag = 'scratch operand']
  #allocation3 [shape = 's32[]', space=sflag, size = 0x4, offset = 0, fixed_abs, tag = 'sflag constant byte address 0x0 - dummy sync flag']
  #allocation4 [shape = 'u32[0]{0}', space=smem, size = 0, offset = 0, fixed_abs, tag = 'smem constant byte address 0x0 - null']
  %s0 = inlined_call_operand.hbm [shape: f32[2,4,16,16], index: 0, kind: input, shape index: {}]
  %s1 = inlined_call_operand.hbm [shape: f32[2,4,16,16], index: 1, kind: output, shape index: {}]
  %s2 = sld [smem:[#allocation0]]
  $region2: #{tpu_custom_call.1} parent=0
    _
  %s4 = ssub.s32 1, %s2
  %s5 = scalar_select 0, %s4, %s2
  %s7 = sshll.u32 1, 14
  %s8 = sxor.u32 4294967295, %s7
  %12 = dma.general %s0, 2048, %s1, [#allocation2], 131072, [#allocation4], 0, 0
  %s13 = smul.u32 2, 4
  %s14 = smul.u32 %s13, 16
  %s15 = smul.u32 %s14, 1
  %s16 = sshll.u32 %s15, 4
  %17 = dma.done [#allocation2], %s16
  %18 = vsyncmov [#allocation2]
  %s19 = vpop.sfrf %18
  %p20 = scmp.eq.s32.totalorder %s19, 0
  %p21 = pneg %p20
  %23 = shalt.err (%p21)

</llo_original>
